<compile_context>
chip_gen: v7x
topology: tpu7x:2x2x1
jax: 0.10.0
libtpu: 0.0.40
codegen_flags: <defaults>
</compile_context>

<pallas_src>
import math

import jax
import jax.numpy as jnp
from jax import lax
from jax.experimental import pallas as pl
from jax.experimental.pallas import tpu as pltpu

LANE = 128
MAX_TILE_ROWS = 512          # 512 * 128 = 65536 spatial elements per block
VMEM_INPUT_BUDGET = 20 * 1024 * 1024   # double-buffered input working set
UNROLL_C = 32                # fully unroll channel loops up to this many classes


def _choose_tile_rows(rows, n_classes, logs_itemsize, yb_itemsize):
    """Largest row-tile that keeps the double-buffered working set bounded."""
    per_row = 2 * n_classes * LANE * (logs_itemsize + yb_itemsize)  # 2 buffers
    per_row += LANE * 4                                             # f32 scratch
    t = max(8, min(MAX_TILE_ROWS, VMEM_INPUT_BUDGET // per_row))
    t -= t % 8
    return rows if rows <= t else t


def _make_ce_kernel(n_classes, n_valid_spatial, tile_rows, needs_mask, unroll_c):
    C = n_classes
    S = n_valid_spatial
    tile_elems = tile_rows * LANE

    def kernel(logs_ref, yb_ref, out_ref, acc_ref):
        s = pl.program_id(1)
        last_s = pl.num_programs(1) - 1

        @pl.when(s == 0)
        def _init():
            acc_ref[...] = jnp.zeros_like(acc_ref)

        l0 = logs_ref[0, 0].astype(jnp.float32)
        y0 = yb_ref[0, 0].astype(jnp.float32)

        if unroll_c:
            # ---- pass 1: running max (for lse) fused with first-max target
            # selection, matching torch.argmax(yb_oh, 1) tie-breaking.
            m, best, tgt = l0, y0, l0
            for c in range(1, C):
                lc = logs_ref[0, c].astype(jnp.float32)
                yc = yb_ref[0, c].astype(jnp.float32)
                m = jnp.maximum(m, lc)
                take = yc > best
                best = jnp.where(take, yc, best)
                tgt = jnp.where(take, lc, tgt)
            # ---- pass 2: numerically stable sum of exps.
            se = jnp.exp(l0 - m)
            for c in range(1, C):
                se = se + jnp.exp(logs_ref[0, c].astype(jnp.float32) - m)
        else:
            def pass1(c, carry):
                m_, best_, tgt_ = carry
                lc = logs_ref[0, c].astype(jnp.float32)
                yc = yb_ref[0, c].astype(jnp.float32)
                m_ = jnp.maximum(m_, lc)
                take = yc > best_
                return (m_, jnp.where(take, yc, best_), jnp.where(take, lc, tgt_))

            m, best, tgt = lax.fori_loop(1, C, pass1, (l0, y0, l0))

            def pass2(c, se_):
                return se_ + jnp.exp(logs_ref[0, c].astype(jnp.float32) - m)

            se = lax.fori_loop(1, C, pass2, jnp.exp(l0 - m))

        # Per-pixel cross entropy, (tile_rows, LANE).
        loss = m + jnp.log(se) - tgt

        if needs_mask:
            # Only the last spatial tile contains invalid (padded / overhang)
            # lanes; keep the mask work off all other grid steps.
            @pl.when(s == last_s)
            def _acc_masked():
                row = lax.broadcasted_iota(jnp.int32, (tile_rows, LANE), 0)
                lane = lax.broadcasted_iota(jnp.int32, (tile_rows, LANE), 1)
                flat = s * tile_elems + row * LANE + lane
                # select (not multiply) so garbage/NaN in masked lanes is dropped
                acc_ref[...] += jnp.where(flat < S, loss, 0.0)

            @pl.when(s != last_s)
            def _acc_full():
                acc_ref[...] += loss
        else:
            acc_ref[...] += loss

        @pl.when(s == last_s)
        def _finalize():
            # Single cross-sublane reduce per batch; lane partials stay in the
            # output, final sum + 1/(N*S) happen in the wrapper.
            out_ref[...] = jnp.sum(
                acc_ref[...], axis=0, keepdims=True
            ).reshape(1, 1, LANE)

    return kernel


def cross_entropy_pallas(logs, yb_oh, mask=None, *, max_tile_rows=None):
    """logs, yb_oh: (N, C, *spatial). Returns scalar mean cross-entropy loss."""
    assert logs.shape == yb_oh.shape
    if mask is not None:
        # TODO(synk): optional `mask` forward argument not implemented.
        raise NotImplementedError("mask is not supported in the Pallas kernel")

    N, C = logs.shape[0], logs.shape[1]
    S = int(math.prod(logs.shape[2:]))

    logs3 = logs.reshape(N, C, S)
    yb3 = yb_oh.reshape(N, C, S)

    # Lane-dense spatial layout: pad S only up to the next multiple of 128
    # (required for the 4D reshape) — no further round-up / full-array copies.
    rows = -(-S // LANE)
    S_128 = rows * LANE
    if S_128 != S:
        pad = S_128 - S
        logs3 = jnp.pad(logs3, ((0, 0), (0, 0), (0, pad)))
        yb3 = jnp.pad(yb3, ((0, 0), (0, 0), (0, pad)))
    logs4 = logs3.reshape(N, C, rows, LANE)
    yb4 = yb3.reshape(N, C, rows, LANE)

    logs_isz = jnp.dtype(logs.dtype).itemsize
    yb_isz = jnp.dtype(yb_oh.dtype).itemsize
    tile_rows = _choose_tile_rows(rows, C, logs_isz, yb_isz)
    if max_tile_rows is not None:
        tile_rows = min(tile_rows, max_tile_rows)
        if tile_rows < rows and tile_rows % 8:
            tile_rows = max(8, (tile_rows // 8) * 8)

    n_s_tiles = -(-rows // tile_rows)
    # Mask needed for S % 128 padding and/or a ragged last row-tile.
    needs_mask = (n_s_tiles * tile_rows * LANE != S)

    kernel = _make_ce_kernel(C, S, tile_rows, needs_mask, unroll_c=(C <= UNROLL_C))

    bytes_in = logs4.size * logs_isz + yb4.size * yb_isz
    cost = pl.CostEstimate(
        flops=7 * N * C * n_s_tiles * tile_rows * LANE,
        transcendentals=N * n_s_tiles * tile_rows * LANE * (C + 1),
        bytes_accessed=bytes_in + N * LANE * 4,
    )

    partials = pl.pallas_call(
        kernel,
        out_shape=jax.ShapeDtypeStruct((N, 1, LANE), jnp.float32),
        grid_spec=pltpu.PrefetchScalarGridSpec(
            num_scalar_prefetch=0,
            grid=(N, n_s_tiles),
            in_specs=[
                pl.BlockSpec((1, C, tile_rows, LANE), lambda b, s: (b, 0, s, 0)),
                pl.BlockSpec((1, C, tile_rows, LANE), lambda b, s: (b, 0, s, 0)),
            ],
            out_specs=pl.BlockSpec((1, 1, LANE), lambda b, s: (b, 0, 0)),
            scratch_shapes=[pltpu.VMEM((tile_rows, LANE), jnp.float32)],
        ),
        compiler_params=pltpu.CompilerParams(
            # Batch axis is independent (per-batch output + per-batch scratch
            # re-init) -> parallel; spatial-tile axis accumulates -> arbitrary.
            dimension_semantics=("parallel", "arbitrary"),
            # Working set is budgeted to ~20 MiB; 32 MiB limit is safe on
            # v5e / v6e / v7x (v5e scoped default is only 16 MiB).
            vmem_limit_bytes=32 * 1024 * 1024,
        ),
        cost_estimate=cost,
    )(logs4, yb4)

    return jnp.sum(partials) * (1.0 / float(N * S))


def cross_entropy_ref(logs, yb_oh):
    """Pure-JAX mirror of the PyTorch module (weight=None, mask=None)."""
    labels = jnp.argmax(yb_oh, axis=1)
    logp = jax.nn.log_softmax(logs, axis=1)
    nll = -jnp.take_along_axis(logp, labels[:, None], axis=1)
    return jnp.mean(nll)


if __name__ == "__main__":
    key = jax.random.PRNGKey(0)
    ks = jax.random.split(key, 10)

    def make_case(k_logits, k_labels, n, c, spatial, oh_dtype=jnp.float32):
        logs = jax.random.normal(k_logits, (n, c) + spatial, dtype=jnp.float32)
        labels = jax.random.randint(k_labels, (n,) + spatial, 0, c)
        yb_oh = jax.nn.one_hot(labels, c, axis=1, dtype=oh_dtype)
        return logs, yb_oh

    cases = [
        # 1: spatial size a multiple of 128 -> no padding / no mask, single tile.
        make_case(ks[0], ks[1], 2, 4, (16, 16)),
        # 2: odd spatial size (S % 128 != 0) exercising the in-kernel mask.
        make_case(ks[2], ks[3], 2, 3, (10, 13)),
        # 3: bf16 one-hot targets (narrow target HBM traffic, in-kernel upcast).
        make_case(ks[6], ks[7], 2, 4, (32, 64), oh_dtype=jnp.bfloat16),
        # 4: larger class count -> lax.fori_loop channel path.
        make_case(ks[8], ks[9], 2, 40, (8, 8)),
    ]
    for i, (logs_i, yb_i) in enumerate(cases):
        out = jax.block_until_ready(cross_entropy_pallas(logs_i, yb_i))
        ref = cross_entropy_ref(logs_i, yb_i)
        assert jnp.allclose(out, ref, atol=1e-5, rtol=1e-5), (i, out, ref)

    # 5: multi-tile spatial axis with a ragged last tile (forced small tile).
    logs_m, yb_m = make_case(ks[4], ks[5], 2, 3, (20, 64))
    out = jax.block_until_ready(cross_entropy_pallas(logs_m, yb_m, max_tile_rows=8))
    ref = cross_entropy_ref(logs_m, yb_m)
    assert jnp.allclose(out, ref, atol=1e-5, rtol=1e-5), (out, ref)

    print("KERNEL_OK")
</pallas_src>

<mosaic_0001>
module attributes {stable_mosaic.version = 11 : i64} {
  func.func @kernel(%arg0: i32, %arg1: i32, %arg2: memref<1x4x2x128xf32, #tpu.memory_space<vmem>>, %arg3: memref<1x4x2x128xf32, #tpu.memory_space<vmem>>, %arg4: memref<1x1x128xf32, #tpu.memory_space<vmem>>, %arg5: memref<2x128xf32, #tpu.memory_space<vmem>>) attributes {dimension_semantics = [#tpu.dimension_semantics<parallel>, #tpu.dimension_semantics<arbitrary>], iteration_bounds = array<i64: 2, 1>, scalar_prefetch = 0 : i64, scratch_operands = 1 : i64, tpu.core_type = #tpu.core_type<tc>, window_params = [{transform_indices = @transform_0, window_bounds = array<i64: 1, 4, 2, 128>}, {transform_indices = @transform_1, window_bounds = array<i64: 1, 4, 2, 128>}, {transform_indices = @transform_2, window_bounds = array<i64: 1, 1, 128>}]} {
    %c0_i32 = arith.constant 0 : i32
    %0 = arith.cmpi eq, %arg1, %c0_i32 : i32
    %1 = arith.extui %0 : i1 to i32
    %c0_i32_0 = arith.constant 0 : i32
    %2 = arith.cmpi ne, %1, %c0_i32_0 : i32
    scf.if %2 {
      %cst = arith.constant 0.000000e+00 : f32
      %56 = vector.broadcast %cst : f32 to vector<2x128xf32>
      %c0_47 = arith.constant 0 : index
      %c0_48 = arith.constant 0 : index
      %57 = vector.load %arg5[%c0_47, %c0_48] : memref<2x128xf32, #tpu.memory_space<vmem>>, vector<2x128xf32>
      tpu.vector_store %arg5[%c0_47, %c0_48], %56 {strides = array<i32>} : memref<2x128xf32, #tpu.memory_space<vmem>>, vector<2x128xf32>,
    } else {
    }
    %c0 = arith.constant 0 : index
    %c0_1 = arith.constant 0 : index
    %c0_2 = arith.constant 0 : index
    %c0_3 = arith.constant 0 : index
    %3 = vector.load %arg2[%c0, %c0_1, %c0_2, %c0_3] : memref<1x4x2x128xf32, #tpu.memory_space<vmem>>, vector<1x1x2x128xf32>
    %4 = vector.shape_cast %3 : vector<1x1x2x128xf32> to vector<2x128xf32>
    %c0_4 = arith.constant 0 : index
    %c0_5 = arith.constant 0 : index
    %c0_6 = arith.constant 0 : index
    %c0_7 = arith.constant 0 : index
    %5 = vector.load %arg3[%c0_4, %c0_5, %c0_6, %c0_7] : memref<1x4x2x128xf32, #tpu.memory_space<vmem>>, vector<1x1x2x128xf32>
    %6 = vector.shape_cast %5 : vector<1x1x2x128xf32> to vector<2x128xf32>
    %c0_8 = arith.constant 0 : index
    %c1 = arith.constant 1 : index
    %c0_9 = arith.constant 0 : index
    %c0_10 = arith.constant 0 : index
    %7 = vector.load %arg2[%c0_8, %c1, %c0_9, %c0_10] : memref<1x4x2x128xf32, #tpu.memory_space<vmem>>, vector<1x1x2x128xf32>
    %8 = vector.shape_cast %7 : vector<1x1x2x128xf32> to vector<2x128xf32>
    %c0_11 = arith.constant 0 : index
    %c1_12 = arith.constant 1 : index
    %c0_13 = arith.constant 0 : index
    %c0_14 = arith.constant 0 : index
    %9 = vector.load %arg3[%c0_11, %c1_12, %c0_13, %c0_14] : memref<1x4x2x128xf32, #tpu.memory_space<vmem>>, vector<1x1x2x128xf32>
    %10 = vector.shape_cast %9 : vector<1x1x2x128xf32> to vector<2x128xf32>
    %11 = arith.maximumf %4, %8 : vector<2x128xf32>
    %12 = arith.cmpf ogt, %10, %6 : vector<2x128xf32>
    %13 = arith.select %12, %10, %6 : vector<2x128xi1>, vector<2x128xf32>
    %14 = arith.select %12, %8, %4 : vector<2x128xi1>, vector<2x128xf32>
    %c0_15 = arith.constant 0 : index
    %c2 = arith.constant 2 : index
    %c0_16 = arith.constant 0 : index
    %c0_17 = arith.constant 0 : index
    %15 = vector.load %arg2[%c0_15, %c2, %c0_16, %c0_17] : memref<1x4x2x128xf32, #tpu.memory_space<vmem>>, vector<1x1x2x128xf32>
    %16 = vector.shape_cast %15 : vector<1x1x2x128xf32> to vector<2x128xf32>
    %c0_18 = arith.constant 0 : index
    %c2_19 = arith.constant 2 : index
    %c0_20 = arith.constant 0 : index
    %c0_21 = arith.constant 0 : index
    %17 = vector.load %arg3[%c0_18, %c2_19, %c0_20, %c0_21] : memref<1x4x2x128xf32, #tpu.memory_space<vmem>>, vector<1x1x2x128xf32>
    %18 = vector.shape_cast %17 : vector<1x1x2x128xf32> to vector<2x128xf32>
    %19 = arith.maximumf %11, %16 : vector<2x128xf32>
    %20 = arith.cmpf ogt, %18, %13 : vector<2x128xf32>
    %21 = arith.select %20, %18, %13 : vector<2x128xi1>, vector<2x128xf32>
    %22 = arith.select %20, %16, %14 : vector<2x128xi1>, vector<2x128xf32>
    %c0_22 = arith.constant 0 : index
    %c3 = arith.constant 3 : index
    %c0_23 = arith.constant 0 : index
    %c0_24 = arith.constant 0 : index
    %23 = vector.load %arg2[%c0_22, %c3, %c0_23, %c0_24] : memref<1x4x2x128xf32, #tpu.memory_space<vmem>>, vector<1x1x2x128xf32>
    %24 = vector.shape_cast %23 : vector<1x1x2x128xf32> to vector<2x128xf32>
    %c0_25 = arith.constant 0 : index
    %c3_26 = arith.constant 3 : index
    %c0_27 = arith.constant 0 : index
    %c0_28 = arith.constant 0 : index
    %25 = vector.load %arg3[%c0_25, %c3_26, %c0_27, %c0_28] : memref<1x4x2x128xf32, #tpu.memory_space<vmem>>, vector<1x1x2x128xf32>
    %26 = vector.shape_cast %25 : vector<1x1x2x128xf32> to vector<2x128xf32>
    %27 = arith.maximumf %19, %24 : vector<2x128xf32>
    %28 = arith.cmpf ogt, %26, %21 : vector<2x128xf32>
    %29 = arith.select %28, %24, %22 : vector<2x128xi1>, vector<2x128xf32>
    %30 = arith.subf %4, %27 : vector<2x128xf32>
    %31 = math.exp %30 : vector<2x128xf32>
    %c0_29 = arith.constant 0 : index
    %c1_30 = arith.constant 1 : index
    %c0_31 = arith.constant 0 : index
    %c0_32 = arith.constant 0 : index
    %32 = vector.load %arg2[%c0_29, %c1_30, %c0_31, %c0_32] : memref<1x4x2x128xf32, #tpu.memory_space<vmem>>, vector<1x1x2x128xf32>
    %33 = vector.shape_cast %32 : vector<1x1x2x128xf32> to vector<2x128xf32>
    %34 = arith.subf %33, %27 : vector<2x128xf32>
    %35 = math.exp %34 : vector<2x128xf32>
    %36 = arith.addf %31, %35 : vector<2x128xf32>
    %c0_33 = arith.constant 0 : index
    %c2_34 = arith.constant 2 : index
    %c0_35 = arith.constant 0 : index
    %c0_36 = arith.constant 0 : index
    %37 = vector.load %arg2[%c0_33, %c2_34, %c0_35, %c0_36] : memref<1x4x2x128xf32, #tpu.memory_space<vmem>>, vector<1x1x2x128xf32>
    %38 = vector.shape_cast %37 : vector<1x1x2x128xf32> to vector<2x128xf32>
    %39 = arith.subf %38, %27 : vector<2x128xf32>
    %40 = math.exp %39 : vector<2x128xf32>
    %41 = arith.addf %36, %40 : vector<2x128xf32>
    %c0_37 = arith.constant 0 : index
    %c3_38 = arith.constant 3 : index
    %c0_39 = arith.constant 0 : index
    %c0_40 = arith.constant 0 : index
    %42 = vector.load %arg2[%c0_37, %c3_38, %c0_39, %c0_40] : memref<1x4x2x128xf32, #tpu.memory_space<vmem>>, vector<1x1x2x128xf32>
    %43 = vector.shape_cast %42 : vector<1x1x2x128xf32> to vector<2x128xf32>
    %44 = arith.subf %43, %27 : vector<2x128xf32>
    %45 = math.exp %44 : vector<2x128xf32>
    %46 = arith.addf %41, %45 : vector<2x128xf32>
    %47 = math.log %46 : vector<2x128xf32>
    %48 = arith.addf %27, %47 : vector<2x128xf32>
    %49 = arith.subf %48, %29 : vector<2x128xf32>
    %c0_41 = arith.constant 0 : index
    %c0_42 = arith.constant 0 : index
    %50 = vector.load %arg5[%c0_41, %c0_42] : memref<2x128xf32, #tpu.memory_space<vmem>>, vector<2x128xf32>
    %51 = arith.addf %50, %49 : vector<2x128xf32>
    %c0_43 = arith.constant 0 : index
    %c0_44 = arith.constant 0 : index
    %52 = vector.load %arg5[%c0_43, %c0_44] : memref<2x128xf32, #tpu.memory_space<vmem>>, vector<2x128xf32>
    tpu.vector_store %arg5[%c0_43, %c0_44], %51 {strides = array<i32>} : memref<2x128xf32, #tpu.memory_space<vmem>>, vector<2x128xf32>,
    %c0_i32_45 = arith.constant 0 : i32
    %53 = arith.cmpi eq, %arg1, %c0_i32_45 : i32
    %54 = arith.extui %53 : i1 to i32
    %c0_i32_46 = arith.constant 0 : i32
    %55 = arith.cmpi ne, %54, %c0_i32_46 : i32
    scf.if %55 {
      %c0_47 = arith.constant 0 : index
      %c0_48 = arith.constant 0 : index
      %56 = vector.load %arg5[%c0_47, %c0_48] : memref<2x128xf32, #tpu.memory_space<vmem>>, vector<2x128xf32>
      %cst = arith.constant dense<0.000000e+00> : vector<128xf32>
      %57 = vector.multi_reduction <add>, %56, %cst [0] : vector<2x128xf32> to vector<128xf32>
      %58 = vector.shape_cast %57 : vector<128xf32> to vector<1x128xf32>
      %59 = vector.shape_cast %58 : vector<1x128xf32> to vector<1x1x128xf32>
      %c0_49 = arith.constant 0 : index
      %c0_50 = arith.constant 0 : index
      %c0_51 = arith.constant 0 : index
      %60 = vector.load %arg4[%c0_49, %c0_50, %c0_51] : memref<1x1x128xf32, #tpu.memory_space<vmem>>, vector<1x1x128xf32>
      tpu.vector_store %arg4[%c0_49, %c0_50, %c0_51], %59 {strides = array<i32>} : memref<1x1x128xf32, #tpu.memory_space<vmem>>, vector<1x1x128xf32>,
    } else {
    }
    return
  }
  func.func @transform_0(%arg0: i32, %arg1: i32) -> (i32, i32, i32, i32) {
    %c0_i32 = arith.constant 0 : i32
    %c0_i32_0 = arith.constant 0 : i32
    %c0_i32_1 = arith.constant 0 : i32
    return %arg0, %c0_i32, %arg1, %c0_i32_0 : i32, i32, i32, i32
  }
  func.func @transform_1(%arg0: i32, %arg1: i32) -> (i32, i32, i32, i32) {
    %c0_i32 = arith.constant 0 : i32
    %c0_i32_0 = arith.constant 0 : i32
    %c0_i32_1 = arith.constant 0 : i32
    return %arg0, %c0_i32, %arg1, %c0_i32_0 : i32, i32, i32, i32
  }
  func.func @transform_2(%arg0: i32, %arg1: i32) -> (i32, i32, i32) {
    %c0_i32 = arith.constant 0 : i32
    %c0_i32_0 = arith.constant 0 : i32
    %c0_i32_1 = arith.constant 0 : i32
    return %arg0, %c0_i32, %c0_i32_0 : i32, i32, i32
  }
}

</mosaic_0001>

<llo_original>
// kernel: tpu_custom_call.1
$region0: #{tpu_custom_call.1}
  #allocation0 [shape = 'u32[]', space=smem, size = 0x4, offset = 0x4, fixed_abs, tag = 'smem constant byte address 0x4 - core index']
  #allocation1 [shape = 'u32[144,128]{1,0:T(1,128)}', space=vmem, size = 0x12000, scoped, tag = 'internal scratch']
  #allocation2 [shape = 'f32[2,128]{1,0:T(2,128)}', space=vmem, size = 0x400, scoped, tag = 'scratch operand']
  %s0 = inlined_call_operand.hbm [shape: f32[2,4,2,128], index: 0, kind: input, shape index: {}]
  %s1 = inlined_call_operand.hbm [shape: f32[2,4,2,128], index: 1, kind: input, shape index: {}]
  %s2 = inlined_call_operand.hbm [shape: f32[2,1,128], index: 2, kind: output, shape index: {}]
  %s3 = sld [smem:[#allocation0]]
  $region57: #{tpu_custom_call.1} parent=0
    _
  %s5 = ssub.s32 1, %s3
  %s6 = scalar_select 0, %s5, %s3
  $region1: #{tpu_custom_call.1} parent=0
    #allocation3 [shape = 'u8[8192]{0}', space=vmem, size = 0x2000, scoped, tag = 'input window, operand 0']
    #allocation4 [shape = 's32[2]{0}', space=sflag, size = 0x8, scoped, tag = 'scoped memory for tpu_custom_call.1']
    #allocation5 [shape = 's32[2]{0}', space=sflag, size = 0x8, scoped, tag = 'scoped memory for tpu_custom_call.1']
    #allocation6 [shape = 'u8[8192]{0}', space=vmem, size = 0x2000, scoped, tag = 'input window, operand 1']
    #allocation7 [shape = 's32[2]{0}', space=sflag, size = 0x8, scoped, tag = 'scoped memory for tpu_custom_call.1']
    #allocation8 [shape = 'u8[1024]{0}', space=vmem, size = 0x400, scoped, tag = 'output window, operand 0']
    %7 = vsyncpa [#allocation4], 0
    %s8 = scalar_lea.sflag [#allocation4], 1
    %9 = vsyncpa %s8, 0
    %10 = vsyncpa [#allocation7], 0
    %s11 = scalar_lea.sflag [#allocation7], 1
    %12 = vsyncpa %s11, 0
    %13 = vsyncpa [#allocation5], 0
    %s14 = scalar_lea.sflag [#allocation5], 1
    %15 = vsyncpa %s14, 0
    loop: start=0, step=1, limit=4
    $region2: #{tpu_custom_call.1} parent=1 // loop_pre_header
      _
    $region3: #{tpu_custom_call.1} parent=1 // loop_header
      %s17 = sphi 0, %s21
      %p18 = scmp.ge.s32.totalorder %s17, 4
      %s24 = sphi 0, %s36
      %s25 = sphi 0, %s32
      %s26 = sphi 0, %s24
      %s27 = sphi 0, %s25
      %s28 = sphi 0, %s26
      %s29 = sphi 0, %s27
      %s41 = sphi 0, %s43
      %s44 = sphi 0, %s41
      %s45 = sphi 0, %s44
      %s61 = sphi 0, %s45
      %s69 = sphi 0, %s71
      %s72 = sphi 0, %s69
      %s73 = sphi 0, %s72
      %s89 = sphi 0, %s73
      %s95 = sphi 0, %s97
      %s98 = sphi 0, %s95
      %s99 = sphi 0, %s98
      %s115 = sphi 0, %s99
    $region4: #{tpu_custom_call.1} parent=1 // loop_header_branch
      %20 = sbr.rel (%p18) target = $region8
    $region5: #{tpu_custom_call.1} parent=1 // loop_body
      %s22 = ssub.s32 %s17, 1
      %s23 = ssub.s32 %s17, 2
      %s30 = sadd.s32 1, %s25
      %p31 = scmp.ge.s32.totalorder %s30, 1
      %s32 = scalar_select %p31, 0, %s30
      %s33 = sadd.s32 1, %s24
      %s34 = scalar_select %p31, %s33, %s24
      %p35 = scmp.ge.s32.totalorder %s34, 2
      %s36 = scalar_select %p35, 0, %s34
      %s37 = ssub.s32 %s24, %s36
      %s38 = ssub.s32 %s25, %s32
      %s39 = sor.u32 %s37, %s38
      %p40 = scmp.eq.s32.totalorder %s39, 0
      %s42 = sadd.s32 %s41, 1
      %s43 = scalar_select %p40, %s41, %s42
      %p46 = pneg %p40
      %p47 = scmp.eq.s32.totalorder %s17, 1
      %p48 = por %p46, %p47
      %p49 = scmp.ne.s32.totalorder %s41, %s44
      %p50 = scmp.eq.s32.totalorder %s17, 0
      %p51 = por %p49, %p50
      %p52 = scmp.ne.s32.totalorder %s41, %s44
      %p53 = scmp.eq.s32.totalorder %s22, 1
      %p54 = por %p52, %p53
      %p55 = scmp.ne.s32.totalorder %s44, %s45
      %p56 = scmp.eq.s32.totalorder %s22, 0
      %p57 = por %p55, %p56
      %p58 = scmp.ne.s32.totalorder %s44, %s45
      %p59 = scmp.eq.s32.totalorder %s23, 1
      %p60 = por %p58, %p59
      %p62 = scmp.ne.s32.totalorder %s45, %s61
      %p63 = scmp.eq.s32.totalorder %s23, 0
      %p64 = por %p62, %p63
      %s65 = ssub.s32 %s24, %s36
      %s66 = ssub.s32 %s25, %s32
      %s67 = sor.u32 %s65, %s66
      %p68 = scmp.eq.s32.totalorder %s67, 0
      %s70 = sadd.s32 %s69, 1
      %s71 = scalar_select %p68, %s69, %s70
      %p74 = pneg %p68
      %p75 = scmp.eq.s32.totalorder %s17, 1
      %p76 = por %p74, %p75
      %p77 = scmp.ne.s32.totalorder %s69, %s72
      %p78 = scmp.eq.s32.totalorder %s17, 0
      %p79 = por %p77, %p78
      %p80 = scmp.ne.s32.totalorder %s69, %s72
      %p81 = scmp.eq.s32.totalorder %s22, 1
      %p82 = por %p80, %p81
      %p83 = scmp.ne.s32.totalorder %s72, %s73
      %p84 = scmp.eq.s32.totalorder %s22, 0
      %p85 = por %p83, %p84
      %p86 = scmp.ne.s32.totalorder %s72, %s73
      %p87 = scmp.eq.s32.totalorder %s23, 1
      %p88 = por %p86, %p87
      %p90 = scmp.ne.s32.totalorder %s73, %s89
      %p91 = scmp.eq.s32.totalorder %s23, 0
      %p92 = por %p90, %p91
      %s93 = ssub.s32 %s24, %s36
      %p94 = scmp.eq.s32.totalorder %s93, 0
      %s96 = sadd.s32 %s95, 1
      %s97 = scalar_select %p94, %s95, %s96
      %p100 = pneg %p94
      %p101 = scmp.eq.s32.totalorder %s17, 1
      %p102 = por %p100, %p101
      %p103 = scmp.ne.s32.totalorder %s95, %s98
      %p104 = scmp.eq.s32.totalorder %s17, 0
      %p105 = por %p103, %p104
      %p106 = scmp.ne.s32.totalorder %s95, %s98
      %p107 = scmp.eq.s32.totalorder %s22, 1
      %p108 = por %p106, %p107
      %p109 = scmp.ne.s32.totalorder %s98, %s99
      %p110 = scmp.eq.s32.totalorder %s22, 0
      %p111 = por %p109, %p110
      %p112 = scmp.ne.s32.totalorder %s98, %s99
      %p113 = scmp.eq.s32.totalorder %s23, 1
      %p114 = por %p112, %p113
      %p116 = scmp.ne.s32.totalorder %s99, %s115
      %p117 = scmp.eq.s32.totalorder %s23, 0
      %p118 = por %p116, %p117
      %p119 = scmp.le.s32.totalorder 1, %s17
      %p120 = scmp.lt.s32.totalorder %s17, 3
      %p121 = pnand %p119, %p120
      %p122 = pneg %p121
      // Predicated region
      $region9: #{tpu_custom_call.1} parent=5 // pred_check
        _
      $region10: #{tpu_custom_call.1} parent=5 // pred_check_branch
        %124 = sbr.rel (%p121) target = $region12
      $region11: #{tpu_custom_call.1} parent=5 // pred_region
        %s125 = ssub.s32 %s17, 1
      $region12: #{tpu_custom_call.1} parent=5 // pred_fallthru
        _
      %p126 = scmp.lt.s32.totalorder %s17, 2
      // Predicated region
      $region13: #{tpu_custom_call.1} parent=5 // pred_check
        %p127 = pneg %p126
      $region14: #{tpu_custom_call.1} parent=5 // pred_check_branch
        %129 = sbr.rel (%p127) target = $region16
      $region15: #{tpu_custom_call.1} parent=5 // pred_region
        // Predicated region
        $region17: #{tpu_custom_call.1} parent=15 // pred_check
          %p130 = pneg %p51
        $region18: #{tpu_custom_call.1} parent=15 // pred_check_branch
          %132 = sbr.rel (%p130) target = $region20
        $region19: #{tpu_custom_call.1} parent=15 // pred_region
          %s133 = sand.u32 %s41, 1
          %s134 = scalar_lea.sflag [#allocation4], %s133
          %s135 = sand.u32 %s41, 1
          %s136 = smul.addr %s135, 8
          %s137 = scalar_lea.vmem [#allocation3], %s136
          %s139 = ssub.s32 128, 128
          %140 = vsyncadd %s134, %s139
          %s141 = smul.addr %s24, 4
          %s142 = sadd.s32 %s25, %s141
          %s143 = smul.addr %s142, 32
          %s144 = scalar_lea.hbm %s0, %s143
          %s145 = sshll.u32 %s137, 4
          %s146 = int_to_ptr.vmem [resolvable:$true] %s145
          %151 = dma.hbm_to_vmem [thread:$0]  %s144, 128, %s146, %s134, 32, 32, 2
        $region20: #{tpu_custom_call.1} parent=15 // pred_fallthru
          _
        // Predicated region
        $region21: #{tpu_custom_call.1} parent=15 // pred_check
          %p152 = pneg %p79
        $region22: #{tpu_custom_call.1} parent=15 // pred_check_branch
          %154 = sbr.rel (%p152) target = $region24
        $region23: #{tpu_custom_call.1} parent=15 // pred_region
          %s155 = sand.u32 %s69, 1
          %s156 = scalar_lea.sflag [#allocation7], %s155
          %s157 = sand.u32 %s69, 1
          %s158 = smul.addr %s157, 8
          %s159 = scalar_lea.vmem [#allocation6], %s158
          %s161 = ssub.s32 128, 128
          %162 = vsyncadd %s156, %s161
          %s163 = smul.addr %s24, 4
          %s164 = sadd.s32 %s25, %s163
          %s165 = smul.addr %s164, 32
          %s166 = scalar_lea.hbm %s1, %s165
          %s167 = sshll.u32 %s159, 4
          %s168 = int_to_ptr.vmem [resolvable:$true] %s167
          %173 = dma.hbm_to_vmem [thread:$0]  %s166, 128, %s168, %s156, 32, 32, 2
        $region24: #{tpu_custom_call.1} parent=15 // pred_fallthru
          _
      $region16: #{tpu_custom_call.1} parent=5 // pred_fallthru
        _
      %p174 = scmp.le.s32.totalorder 1, %s17
      %p175 = scmp.lt.s32.totalorder %s17, 3
      %p176 = pnand %p174, %p175
      %p177 = pneg %p176
      // Predicated region
      $region25: #{tpu_custom_call.1} parent=5 // pred_check
        _
      $region26: #{tpu_custom_call.1} parent=5 // pred_check_branch
        %179 = sbr.rel (%p176) target = $region28
      $region27: #{tpu_custom_call.1} parent=5 // pred_region
        %s180 = ssub.s32 %s17, 1
        %s181 = sand.u32 %s44, 1
        %s182 = scalar_lea.sflag [#allocation4], %s181
        %s183 = sand.u32 %s44, 1
        %s184 = smul.addr %s183, 8
        %s185 = scalar_lea.vmem [#allocation3], %s184
        // Predicated region
        $region29: #{tpu_custom_call.1} parent=27 // pred_check
          %p186 = pneg %p57
        $region30: #{tpu_custom_call.1} parent=27 // pred_check_branch
          %188 = sbr.rel (%p186) target = $region32
        $region31: #{tpu_custom_call.1} parent=27 // pred_region
          %189 = dma.done %s182, 128
        $region32: #{tpu_custom_call.1} parent=27 // pred_fallthru
          _
        %s190 = sand.u32 %s72, 1
        %s191 = scalar_lea.sflag [#allocation7], %s190
        %s192 = sand.u32 %s72, 1
        %s193 = smul.addr %s192, 8
        %s194 = scalar_lea.vmem [#allocation6], %s193
        // Predicated region
        $region33: #{tpu_custom_call.1} parent=27 // pred_check
          %p195 = pneg %p85
        $region34: #{tpu_custom_call.1} parent=27 // pred_check_branch
          %197 = sbr.rel (%p195) target = $region36
        $region35: #{tpu_custom_call.1} parent=27 // pred_region
          %198 = dma.done %s191, 128
        $region36: #{tpu_custom_call.1} parent=27 // pred_fallthru
          _
        %s199 = sand.u32 %s44, 1
        %s200 = scalar_lea.sflag [#allocation4], %s199
        %s201 = sand.u32 %s44, 1
        %s202 = smul.addr %s201, 8
        %s203 = scalar_lea.vmem [#allocation3], %s202
        %p204 = pneg %p57
        %p205 = pneg %p54
        %s206 = sand.u32 %s72, 1
        %s207 = scalar_lea.sflag [#allocation7], %s206
        %s208 = sand.u32 %s72, 1
        %s209 = smul.addr %s208, 8
        %s210 = scalar_lea.vmem [#allocation6], %s209
        %p211 = pneg %p85
        %p212 = pneg %p82
        %p213 = pneg %p111
        %p214 = pneg %p108
        %s215 = sand.u32 %s98, 1
        %s216 = scalar_lea.sflag [#allocation5], %s215
        %s217 = sand.u32 %s98, 1
        %s218 = scalar_lea.vmem [#allocation8], %s217
        %p219 = scmp.eq.s32.totalorder %s27, 0
        // Predicated region
        $region37: #{tpu_custom_call.1} parent=27 // pred_check
          %p220 = pneg %p219
        $region38: #{tpu_custom_call.1} parent=27 // pred_check_branch
          %222 = sbr.rel (%p220) target = $region40
        $region39: #{tpu_custom_call.1} parent=27 // pred_region
          %223 = vst [vmem:[#allocation2] sm:$0x3] 0.0
        $region40: #{tpu_custom_call.1} parent=27 // pred_fallthru
          _
        %v224 = vld [vmem:[%s185] sm:$0x3]
        %v225 = vld [vmem:[%s194] sm:$0x3]
        %s226 = scalar_lea.vmem %s185, 2 [#allocation3]
        %v227 = vld [vmem:[%s226] sm:$0x3]
        %s228 = scalar_lea.vmem %s194, 2 [#allocation6]
        %v229 = vld [vmem:[%s228] sm:$0x3]
        %v230 = vmax.f32 %v224, %v227
        %vm231 = vcmp.gt.f32.partialorder %v229, %v225
        %v232 = vsel %vm231, %v229, %v225
        %v233 = vsel %vm231, %v227, %v224
        %s234 = scalar_lea.vmem %s185, 4 [#allocation3]
        %v235 = vld [vmem:[%s234] sm:$0x3]
        %s236 = scalar_lea.vmem %s194, 4 [#allocation6]
        %v237 = vld [vmem:[%s236] sm:$0x3]
        %v238 = vmax.f32 %v230, %v235
        %vm239 = vcmp.gt.f32.partialorder %v237, %v232
        %v240 = vsel %vm239, %v237, %v232
        %v241 = vsel %vm239, %v235, %v233
        %s242 = scalar_lea.vmem %s185, 6 [#allocation3]
        %v243 = vld [vmem:[%s242] sm:$0x3]
        %s244 = scalar_lea.vmem %s194, 6 [#allocation6]
        %v245 = vld [vmem:[%s244] sm:$0x3]
        %v246 = vmax.f32 %v238, %v243
        %vm247 = vcmp.gt.f32.partialorder %v245, %v240
        %v248 = vsel %vm247, %v243, %v241
        %v249 = vsub.f32 %v224, %v246
        %v250 = vmul.f32 %v249, 1.442695
        %v251 = vpow.pop %v250
        %v252 = vsub.f32 %v227, %v246
        %v253 = vmul.f32 %v252, 1.442695
        %v254 = vpow.pop %v253
        %v255 = vadd.f32 %v251, %v254
        %v256 = vsub.f32 %v235, %v246
        %v257 = vmul.f32 %v256, 1.442695
        %v258 = vpow.pop %v257
        %v259 = vadd.f32 %v255, %v258
        %v260 = vsub.f32 %v243, %v246
        %v261 = vmul.f32 %v260, 1.442695
        %v262 = vpow.pop %v261
        %v263 = vadd.f32 %v259, %v262
        %v264 = vlog2.pop %v263
        %v265 = vmul.f32 %v264, 0.6931472
        %v266 = vadd.f32 %v246, %v265
        %v267 = vsub.f32 %v266, %v248
        %v268 = vld [vmem:[#allocation2] sm:$0x3]
        %v269 = vadd.f32 %v268, %v267
        %270 = vst [vmem:[#allocation2] sm:$0x3] %v269
        // Predicated region
        $region41: #{tpu_custom_call.1} parent=27 // pred_check
          %p271 = pneg %p219
        $region42: #{tpu_custom_call.1} parent=27 // pred_check_branch
          %273 = sbr.rel (%p271) target = $region44
        $region43: #{tpu_custom_call.1} parent=27 // pred_region
          %v274 = vld [vmem:[#allocation2] sm:$0x3]
          %vm275 = vcmask 1041408
          %v276 = vsel %vm275, %v274, 0.0
          %v277 = vrot.slane %v276, 4
          %v278 = vadd.f32 %v276, %v277
          %v279 = vrot.slane %v278, 2
          %v280 = vadd.f32 %v278, %v279
          %v281 = vrot.slane %v280, 1
          %v282 = vadd.f32 %v280, %v281
          %283 = vst [vmem:[%s218] sm:$0x1] %v282
        $region44: #{tpu_custom_call.1} parent=27 // pred_fallthru
          _
        %s284 = sand.u32 %s98, 1
        %s285 = scalar_lea.sflag [#allocation5], %s284
        %s286 = sand.u32 %s98, 1
        %s287 = scalar_lea.vmem [#allocation8], %s286
        // Predicated region
        $region45: #{tpu_custom_call.1} parent=27 // pred_check
          %p288 = pneg %p108
        $region46: #{tpu_custom_call.1} parent=27 // pred_check_branch
          %290 = sbr.rel (%p288) target = $region48
        $region47: #{tpu_custom_call.1} parent=27 // pred_region
          %s292 = ssub.s32 16, 16
          %293 = vsyncadd %s285, %s292
          %s294 = smul.addr %s26, 16
          %s295 = scalar_lea.hbm %s2, %s294
          %s297 = sshll.u32 %s287, 4
          %s298 = int_to_ptr.vmem [resolvable:$true] %s297
          %300 = dma.vmem_to_hbm [thread:$0]  %s298, 16, %s295, %s285
        $region48: #{tpu_custom_call.1} parent=27 // pred_fallthru
          _
      $region28: #{tpu_custom_call.1} parent=5 // pred_fallthru
        _
      %p301 = scmp.le.s32.totalorder 2, %s17
      // Predicated region
      $region49: #{tpu_custom_call.1} parent=5 // pred_check
        %p302 = pneg %p301
      $region50: #{tpu_custom_call.1} parent=5 // pred_check_branch
        %304 = sbr.rel (%p302) target = $region52
      $region51: #{tpu_custom_call.1} parent=5 // pred_region
        %s305 = ssub.s32 %s17, 2
        // Predicated region
        $region53: #{tpu_custom_call.1} parent=51 // pred_check
          %p306 = pneg %p114
        $region54: #{tpu_custom_call.1} parent=51 // pred_check_branch
          %308 = sbr.rel (%p306) target = $region56
        $region55: #{tpu_custom_call.1} parent=51 // pred_region
          %s309 = sand.u32 %s99, 1
          %s310 = scalar_lea.sflag [#allocation5], %s309
          %s311 = sand.u32 %s99, 1
          %s312 = scalar_lea.vmem [#allocation8], %s311
          %313 = dma.done %s310, 16
        $region56: #{tpu_custom_call.1} parent=51 // pred_fallthru
          _
      $region52: #{tpu_custom_call.1} parent=5 // pred_fallthru
        _
    $region6: #{tpu_custom_call.1} parent=1 // loop_footer
      %s21 = sadd.s32 1, %s17
    $region7: #{tpu_custom_call.1} parent=1 // loop_footer_branch
      %16 = sbr.rel target = $region3
    $region8: #{tpu_custom_call.1} parent=1 // loop_exit
      _
    %314 = vsyncpa [#allocation4], 1
    %s315 = scalar_lea.sflag [#allocation4], 1
    %316 = vsyncpa %s315, 1
    %317 = vsyncpa [#allocation7], 1
    %s318 = scalar_lea.sflag [#allocation7], 1
    %319 = vsyncpa %s318, 1
    %320 = vsyncpa [#allocation5], 1
    %s321 = scalar_lea.sflag [#allocation5], 1
    %322 = vsyncpa %s321, 1

</llo_original>
